<compile_context>
chip_gen: v7x
topology: tpu7x:2x2x1
jax: 0.10.0
libtpu: 0.0.40
codegen_flags: <defaults>
</compile_context>

<pallas_src>
import functools

import jax
import jax.numpy as jnp
from jax.experimental import pallas as pl
from jax.experimental.pallas import tpu as pltpu

INPUT_SIZE = 8
HIDDEN_SIZE = 64
OUTPUT_SIZE = 4

# Batches at or below this run as plain XLA (DQN act() path): the pallas
# dispatch + pad would dominate the ~10 KFLOP of math.
SMALL_BATCH_B = 512


def _round_up(n: int, m: int) -> int:
    return ((n + m - 1) // m) * m


def _cdiv(a: int, b: int) -> int:
    return -(-a // b)


def _tpu_generation():
    """Best-effort TPU generation (5, 6, 7, ...) or None if unknown."""
    try:
        dev = jax.devices()[0]
        if dev.platform != "tpu":
            return None
        kind = dev.device_kind.lower()
    except Exception:  # pragma: no cover - defensive
        return None
    for gen in (7, 6, 5, 4):
        if f"v{gen}" in kind or kind.startswith(f"tpu{gen}") or f"tpu {gen}" in kind:
            return gen
    return None


def _default_tile_b(gen) -> int:
    if gen is not None and gen <= 5:
        # v5e: lowest HBM BW, 16 MiB scoped VMEM default, f32 intermediates.
        return 8192
    if gen is not None and gen >= 7:
        # v7x: 64 MiB physical VMEM per TC; megacore split provides the rest.
        return 8192
    # v6e / unknown.
    return 16384


def _pick_config(B: int, tile_b):
    gen = _tpu_generation()
    if tile_b is None:
        tile_b = _default_tile_b(gen)
    # Clamp to the (128-rounded) batch and round up to a lane multiple
    # instead of asserting on odd user-supplied values.
    tile_b = _round_up(max(1, min(int(tile_b), _round_up(B, 128))), 128)
    if gen is not None and gen >= 7:
        # Megacore-aware: ensure >= 2 batch tiles so both TensorCores get work.
        tile_b = max(128, min(tile_b, _round_up(_cdiv(B, 2), 128)))
    compute_dtype = "float32" if (gen is not None and gen <= 5) else "bfloat16"
    return tile_b, compute_dtype


def _vmem_limit_bytes(tile_b: int, compute_itemsize: int) -> int:
    """Conservative per-step VMEM footprint (+25% headroom).

    The (tile_b, 8) input block is budgeted lane-padded to 128 lanes, which is
    the worst-case VMEM layout for a narrow minor dim.
    """
    lane = 128
    in_blocks = 2 * tile_b * lane * 4                      # double-buffered f32 input
    x_cast = tile_b * lane * 2                             # in-kernel bf16 copy of x
    out_blocks = 2 * 8 * tile_b * 4                        # double-buffered f32 output (sublane-padded)
    hidden = 2 * HIDDEN_SIZE * tile_b * (4 + compute_itemsize)  # h1/h2: f32 pop + stored copy
    last = 8 * tile_b * 4                                  # layer-3 f32 result
    weights = 256 * 1024                                   # weights/biases (padded, double-buffered)
    est = in_blocks + x_cast + out_blocks + hidden + last + weights
    # Floor at the usual 32 MiB scoped budget, cap well under v7x's 64 MiB.
    return min(max(int(est * 1.25), 32 * 1024 * 1024), 56 * 1024 * 1024)


def _mlp_kernel(x_ref, w1_ref, b1_ref, w2_ref, b2_ref, w3_ref, b3_ref, o_ref,
                *, compute_dtype):
    # x_ref:  (TILE_B, INPUT_SIZE) f32, batch-major (no wrapper transpose).
    # w*:     (out, in) bf16;  b*: (out, 1) f32.
    # o_ref:  (OUTPUT_SIZE, TILE_B) f32, feature-major (lane-dense stores).
    x = x_ref[...].astype(jnp.bfloat16)

    # layer1: Linear(8 -> 64) + ReLU.  Contract the feature dim (minor dim of
    # both operands, the standard q.k^T pattern) -> feature-major (64, TILE_B).
    h1 = jax.lax.dot_general(
        w1_ref[...], x,
        dimension_numbers=(((1,), (1,)), ((), ())),
        preferred_element_type=jnp.float32,
    ).astype(compute_dtype)
    h1 = jnp.maximum(h1 + b1_ref[...].astype(compute_dtype), 0)
    h1 = h1.astype(jnp.bfloat16)          # bf16 MXU operand for the next layer

    # layer2: Linear(64 -> 64) + ReLU.
    h2 = jnp.dot(w2_ref[...], h1, preferred_element_type=jnp.float32)
    h2 = h2.astype(compute_dtype)
    h2 = jnp.maximum(h2 + b2_ref[...].astype(compute_dtype), 0)
    h2 = h2.astype(jnp.bfloat16)

    # layer3: Linear(64 -> 4), no activation; f32 accumulation and store.
    out = jnp.dot(w3_ref[...], h2, preferred_element_type=jnp.float32)
    o_ref[...] = (out + b3_ref[...]).astype(o_ref.dtype)


@functools.partial(jax.jit, static_argnames=("tile_b", "compute_dtype"))
def _forward_pallas(state, params, *, tile_b: int, compute_dtype: str):
    B = state.shape[0]
    b_pad = _round_up(B, tile_b)
    num_tiles = b_pad // tile_b

    x = state
    if b_pad != B:
        x = jnp.pad(x, ((0, b_pad - B), (0, 0)))

    w1, b1 = params["w1"], params["b1"]
    w2, b2 = params["w2"], params["b2"]
    w3, b3 = params["w3"], params["b3"]

    # Weights/biases: full-array blocks with constant index_maps -> DMA'd once,
    # VMEM-resident across all grid steps.
    resident = lambda a: pl.BlockSpec(a.shape, lambda i: (0, 0))

    cdt = jnp.bfloat16 if compute_dtype == "bfloat16" else jnp.float32
    cdt_size = 2 if compute_dtype == "bfloat16" else 4
    kernel = functools.partial(_mlp_kernel, compute_dtype=cdt)

    out_t = pl.pallas_call(
        kernel,
        grid=(num_tiles,),
        in_specs=[
            pl.BlockSpec((tile_b, INPUT_SIZE), lambda i: (i, 0)),
            resident(w1), resident(b1),
            resident(w2), resident(b2),
            resident(w3), resident(b3),
        ],
        out_specs=pl.BlockSpec((OUTPUT_SIZE, tile_b), lambda i: (0, i)),
        out_shape=jax.ShapeDtypeStruct((OUTPUT_SIZE, b_pad), jnp.float32),
        compiler_params=pltpu.CompilerParams(
            # Independent batch tiles: megacore-shardable on v7x; harmless
            # no-op on single-TensorCore v5e/v6e.
            dimension_semantics=("parallel",),
            vmem_limit_bytes=_vmem_limit_bytes(tile_b, cdt_size),
        ),
    )(x, w1, b1, w2, b2, w3, b3)

    # Strip batch padding; cheap (4, B) -> (B, 4) transpose to preserve the
    # PyTorch batch-major return contract.
    return jnp.transpose(out_t[:, :B])


@jax.jit
def _forward_xla(state, params):
    """Small-batch fast path (plain XLA), same bf16-operand / f32-acc numerics."""
    x = state.astype(jnp.bfloat16)
    h1 = jnp.maximum(
        jnp.dot(x, params["w1"].T, preferred_element_type=jnp.float32)
        + params["b1"].T, 0.0).astype(jnp.bfloat16)
    h2 = jnp.maximum(
        jnp.dot(h1, params["w2"].T, preferred_element_type=jnp.float32)
        + params["b2"].T, 0.0).astype(jnp.bfloat16)
    return (jnp.dot(h2, params["w3"].T, preferred_element_type=jnp.float32)
            + params["b3"].T)


def neural_net_forward_pallas(state, params, *, tile_b=None):
    """Always run the Pallas kernel.  state: (B, 8) f32 -> (B, 4) f32."""
    tb, compute = _pick_config(state.shape[0], tile_b)
    return _forward_pallas(state, params, tile_b=tb, compute_dtype=compute)


def neural_net_forward(state, params, *, tile_b=None):
    """Forward pass of the DQN NeuralNet (dispatching wrapper).

    Tiny batches (the DQN act() call) go to plain XLA; training-size batches
    go to the fused Pallas kernel.
    """
    if state.shape[0] <= SMALL_BATCH_B:
        return _forward_xla(state, params)
    return neural_net_forward_pallas(state, params, tile_b=tile_b)


def init_params(key):
    """PyTorch nn.Linear default init: U(-1/sqrt(fan_in), +1/sqrt(fan_in)).
    Weights kept in PyTorch's native (out_features, in_features) layout,
    stored bf16 (MXU-native).  Biases stay f32 as (out, 1) columns."""
    def linear(k, fan_in, fan_out):
        kw, kb = jax.random.split(k)
        bound = 1.0 / jnp.sqrt(float(fan_in))
        w = jax.random.uniform(kw, (fan_out, fan_in), jnp.float32, -bound, bound)
        b = jax.random.uniform(kb, (fan_out, 1), jnp.float32, -bound, bound)
        return w.astype(jnp.bfloat16), b

    k1, k2, k3 = jax.random.split(key, 3)
    w1, b1 = linear(k1, INPUT_SIZE, HIDDEN_SIZE)
    w2, b2 = linear(k2, HIDDEN_SIZE, HIDDEN_SIZE)
    w3, b3 = linear(k3, HIDDEN_SIZE, OUTPUT_SIZE)
    return {"w1": w1, "b1": b1, "w2": w2, "b2": b2, "w3": w3, "b3": b3}


def reference_forward(state, params):
    """Pure-JAX f32 reference with the PyTorch module's semantics."""
    w1 = params["w1"].astype(jnp.float32)
    w2 = params["w2"].astype(jnp.float32)
    w3 = params["w3"].astype(jnp.float32)
    h1 = jnp.maximum(state @ w1.T + params["b1"].T, 0.0)
    h2 = jnp.maximum(h1 @ w2.T + params["b2"].T, 0.0)
    return h2 @ w3.T + params["b3"].T


if __name__ == "__main__":
    key = jax.random.PRNGKey(0)
    k_params, k_state = jax.random.split(key)
    params = init_params(k_params)

    # 1) Pallas kernel path: non-multiple batch with a small tile exercises
    #    padding plus a multi-step, software-pipelined (and megacore-parallel
    #    on v7x) grid.  bf16 MXU operands vs f32 reference -> ~0.5% rel err.
    batch = 300
    state = jax.random.normal(k_state, (batch, INPUT_SIZE), jnp.float32)
    out = neural_net_forward_pallas(state, params, tile_b=128)
    jax.block_until_ready(out)
    ref = reference_forward(state, params)
    assert out.shape == (batch, OUTPUT_SIZE)
    assert jnp.allclose(out, ref, atol=3e-2, rtol=3e-2), float(
        jnp.max(jnp.abs(out - ref)))

    # 2) Dispatcher small-batch fast path (typical DQN act() call).
    batch2 = 8
    state2 = jax.random.normal(jax.random.PRNGKey(1), (batch2, INPUT_SIZE),
                               jnp.float32)
    out2 = neural_net_forward(state2, params)
    jax.block_until_ready(out2)
    ref2 = reference_forward(state2, params)
    assert out2.shape == (batch2, OUTPUT_SIZE)
    assert jnp.allclose(out2, ref2, atol=3e-2, rtol=3e-2)

    print("KERNEL_OK")
</pallas_src>

<mosaic_0001>
module attributes {stable_mosaic.version = 11 : i64} {
  func.func @_mlp_kernel(%arg0: i32, %arg1: memref<128x8xf32, #tpu.memory_space<vmem>>, %arg2: memref<64x8xbf16, #tpu.memory_space<vmem>>, %arg3: memref<64x1xf32, #tpu.memory_space<vmem>>, %arg4: memref<64x64xbf16, #tpu.memory_space<vmem>>, %arg5: memref<64x1xf32, #tpu.memory_space<vmem>>, %arg6: memref<4x64xbf16, #tpu.memory_space<vmem>>, %arg7: memref<4x1xf32, #tpu.memory_space<vmem>>, %arg8: memref<4x128xf32, #tpu.memory_space<vmem>>) attributes {dimension_semantics = [#tpu.dimension_semantics<parallel>], iteration_bounds = array<i64: 3>, scalar_prefetch = 0 : i64, scratch_operands = 0 : i64, tpu.core_type = #tpu.core_type<tc>, window_params = [{transform_indices = @transform_0, window_bounds = array<i64: 128, 8>}, {pipeline_mode = #tpu.pipeline_mode<synchronous>, transform_indices = @transform_1, window_bounds = array<i64: 64, 8>}, {pipeline_mode = #tpu.pipeline_mode<synchronous>, transform_indices = @transform_2, window_bounds = array<i64: 64, 1>}, {pipeline_mode = #tpu.pipeline_mode<synchronous>, transform_indices = @transform_3, window_bounds = array<i64: 64, 64>}, {pipeline_mode = #tpu.pipeline_mode<synchronous>, transform_indices = @transform_4, window_bounds = array<i64: 64, 1>}, {pipeline_mode = #tpu.pipeline_mode<synchronous>, transform_indices = @transform_5, window_bounds = array<i64: 4, 64>}, {pipeline_mode = #tpu.pipeline_mode<synchronous>, transform_indices = @transform_6, window_bounds = array<i64: 4, 1>}, {transform_indices = @transform_7, window_bounds = array<i64: 4, 128>}]} {
    %c0 = arith.constant 0 : index
    %c0_0 = arith.constant 0 : index
    %0 = vector.load %arg1[%c0, %c0_0] : memref<128x8xf32, #tpu.memory_space<vmem>>, vector<128x8xf32>
    %1 = arith.truncf %0 : vector<128x8xf32> to vector<128x8xbf16>
    %c0_1 = arith.constant 0 : index
    %c0_2 = arith.constant 0 : index
    %2 = vector.load %arg2[%c0_1, %c0_2] : memref<64x8xbf16, #tpu.memory_space<vmem>>, vector<64x8xbf16>
    %cst = arith.constant dense<0.000000e+00> : vector<64x128xf32>
    %3 = tpu.matmul %2, %1, %cst {dimension_numbers = #tpu.dot_dimension_numbers<[1], [1], [0], [0], [0, 0, 1, 0], [], []>} : vector<64x8xbf16>, vector<128x8xbf16>, vector<64x128xf32> -> vector<64x128xf32>
    %4 = arith.truncf %3 : vector<64x128xf32> to vector<64x128xbf16>
    %c0_3 = arith.constant 0 : index
    %c0_4 = arith.constant 0 : index
    %5 = vector.load %arg3[%c0_3, %c0_4] : memref<64x1xf32, #tpu.memory_space<vmem>>, vector<64x1xf32>
    %6 = arith.truncf %5 : vector<64x1xf32> to vector<64x1xbf16>
    %7 = vector.broadcast %6 : vector<64x1xbf16> to vector<64x128xbf16>
    %8 = arith.addf %4, %7 : vector<64x128xbf16>
    %cst_5 = arith.constant 0.000000e+00 : bf16
    %9 = vector.broadcast %cst_5 : bf16 to vector<64x128xbf16>
    %10 = arith.maximumf %8, %9 : vector<64x128xbf16>
    %c0_6 = arith.constant 0 : index
    %c0_7 = arith.constant 0 : index
    %11 = vector.load %arg4[%c0_6, %c0_7] : memref<64x64xbf16, #tpu.memory_space<vmem>>, vector<64x64xbf16>
    %cst_8 = arith.constant dense<0.000000e+00> : vector<64x128xf32>
    %12 = tpu.matmul %11, %10, %cst_8 {dimension_numbers = #tpu.dot_dimension_numbers<[1], [0], [0], [1], [0, 0, 1, 1], [], []>} : vector<64x64xbf16>, vector<64x128xbf16>, vector<64x128xf32> -> vector<64x128xf32>
    %13 = arith.truncf %12 : vector<64x128xf32> to vector<64x128xbf16>
    %c0_9 = arith.constant 0 : index
    %c0_10 = arith.constant 0 : index
    %14 = vector.load %arg5[%c0_9, %c0_10] : memref<64x1xf32, #tpu.memory_space<vmem>>, vector<64x1xf32>
    %15 = arith.truncf %14 : vector<64x1xf32> to vector<64x1xbf16>
    %16 = vector.broadcast %15 : vector<64x1xbf16> to vector<64x128xbf16>
    %17 = arith.addf %13, %16 : vector<64x128xbf16>
    %cst_11 = arith.constant 0.000000e+00 : bf16
    %18 = vector.broadcast %cst_11 : bf16 to vector<64x128xbf16>
    %19 = arith.maximumf %17, %18 : vector<64x128xbf16>
    %c0_12 = arith.constant 0 : index
    %c0_13 = arith.constant 0 : index
    %20 = vector.load %arg6[%c0_12, %c0_13] : memref<4x64xbf16, #tpu.memory_space<vmem>>, vector<4x64xbf16>
    %cst_14 = arith.constant dense<0.000000e+00> : vector<4x128xf32>
    %21 = tpu.matmul %20, %19, %cst_14 {dimension_numbers = #tpu.dot_dimension_numbers<[1], [0], [0], [1], [0, 0, 1, 1], [], []>} : vector<4x64xbf16>, vector<64x128xbf16>, vector<4x128xf32> -> vector<4x128xf32>
    %c0_15 = arith.constant 0 : index
    %c0_16 = arith.constant 0 : index
    %22 = vector.load %arg7[%c0_15, %c0_16] : memref<4x1xf32, #tpu.memory_space<vmem>>, vector<4x1xf32>
    %23 = vector.broadcast %22 : vector<4x1xf32> to vector<4x128xf32>
    %24 = arith.addf %21, %23 : vector<4x128xf32>
    %c0_17 = arith.constant 0 : index
    %c0_18 = arith.constant 0 : index
    %25 = vector.load %arg8[%c0_17, %c0_18] : memref<4x128xf32, #tpu.memory_space<vmem>>, vector<4x128xf32>
    tpu.vector_store %arg8[%c0_17, %c0_18], %24 {strides = array<i32>} : memref<4x128xf32, #tpu.memory_space<vmem>>, vector<4x128xf32>,
    return
  }
  func.func @transform_0(%arg0: i32) -> (i32, i32) {
    %c0_i32 = arith.constant 0 : i32
    %c0_i32_0 = arith.constant 0 : i32
    return %arg0, %c0_i32 : i32, i32
  }
  func.func @transform_1(%arg0: i32) -> (i32, i32) {
    %c0_i32 = arith.constant 0 : i32
    %c0_i32_0 = arith.constant 0 : i32
    %c0_i32_1 = arith.constant 0 : i32
    return %c0_i32, %c0_i32_0 : i32, i32
  }
  func.func @transform_2(%arg0: i32) -> (i32, i32) {
    %c0_i32 = arith.constant 0 : i32
    %c0_i32_0 = arith.constant 0 : i32
    %c0_i32_1 = arith.constant 0 : i32
    return %c0_i32, %c0_i32_0 : i32, i32
  }
  func.func @transform_3(%arg0: i32) -> (i32, i32) {
    %c0_i32 = arith.constant 0 : i32
    %c0_i32_0 = arith.constant 0 : i32
    %c0_i32_1 = arith.constant 0 : i32
    return %c0_i32, %c0_i32_0 : i32, i32
  }
  func.func @transform_4(%arg0: i32) -> (i32, i32) {
    %c0_i32 = arith.constant 0 : i32
    %c0_i32_0 = arith.constant 0 : i32
    %c0_i32_1 = arith.constant 0 : i32
    return %c0_i32, %c0_i32_0 : i32, i32
  }
  func.func @transform_5(%arg0: i32) -> (i32, i32) {
    %c0_i32 = arith.constant 0 : i32
    %c0_i32_0 = arith.constant 0 : i32
    %c0_i32_1 = arith.constant 0 : i32
    return %c0_i32, %c0_i32_0 : i32, i32
  }
  func.func @transform_6(%arg0: i32) -> (i32, i32) {
    %c0_i32 = arith.constant 0 : i32
    %c0_i32_0 = arith.constant 0 : i32
    %c0_i32_1 = arith.constant 0 : i32
    return %c0_i32, %c0_i32_0 : i32, i32
  }
  func.func @transform_7(%arg0: i32) -> (i32, i32) {
    %c0_i32 = arith.constant 0 : i32
    %c0_i32_0 = arith.constant 0 : i32
    return %c0_i32, %arg0 : i32, i32
  }
}

</mosaic_0001>

<llo_original>
// kernel: _forward_pallas.1
$region0: #{_forward_pallas.1}
  #allocation0 [shape = 'u32[]', space=smem, size = 0x4, offset = 0x4, fixed_abs, tag = 'smem constant byte address 0x4 - core index']
  #allocation1 [shape = 'u32[144,128]{1,0:T(1,128)}', space=vmem, size = 0x12000, scoped, tag = 'internal scratch']
  %s0 = inlined_call_operand.vmem [shape: f32[384,8], index: 0, kind: input, shape index: {}]
  %s1 = inlined_call_operand.vmem [shape: bf16[64,8], index: 1, kind: input, shape index: {}]
  %s2 = inlined_call_operand.vmem [shape: f32[64,1], index: 2, kind: input, shape index: {}]
  %s3 = inlined_call_operand.vmem [shape: bf16[64,64], index: 3, kind: input, shape index: {}]
  %s4 = inlined_call_operand.vmem [shape: f32[64,1], index: 4, kind: input, shape index: {}]
  %s5 = inlined_call_operand.vmem [shape: bf16[4,64], index: 5, kind: input, shape index: {}]
  %s6 = inlined_call_operand.vmem [shape: f32[4,1], index: 6, kind: input, shape index: {}]
  %s7 = inlined_call_operand.vmem [shape: f32[4,384], index: 7, kind: output, shape index: {}]
  %s8 = sld [smem:[#allocation0]]
  $region61: #{_forward_pallas.1} parent=0
    _
  %s10 = ssub.s32 1, %s8
  %s11 = scalar_select 0, %s10, %s8
  loop: start=0, step=1, limit=5
  $region2: #{_forward_pallas.1} parent=0 // loop_pre_header
    _
  $region3: #{_forward_pallas.1} parent=0 // loop_header
    %s13 = sphi 0, %s17
    %p14 = scmp.ge.s32.totalorder %s13, 5
    %s23 = sphi 0, %s25
    %s26 = sphi 0, %s23
    %s27 = sphi 0, %s26
    %s43 = sphi 0, %s27
    %s47 = sphi 0, %s47
    %s49 = sphi 0, %s47
    %s50 = sphi 0, %s49
    %s64 = sphi 0, %s50
    %s68 = sphi 0, %s68
    %s70 = sphi 0, %s68
    %s71 = sphi 0, %s70
    %s85 = sphi 0, %s71
    %s89 = sphi 0, %s89
    %s91 = sphi 0, %s89
    %s92 = sphi 0, %s91
    %s106 = sphi 0, %s92
    %s110 = sphi 0, %s110
    %s112 = sphi 0, %s110
    %s113 = sphi 0, %s112
    %s127 = sphi 0, %s113
    %s131 = sphi 0, %s131
    %s133 = sphi 0, %s131
    %s134 = sphi 0, %s133
    %s148 = sphi 0, %s134
    %s152 = sphi 0, %s152
    %s154 = sphi 0, %s152
    %s155 = sphi 0, %s154
    %s169 = sphi 0, %s155
    %s175 = sphi 0, %s177
    %s178 = sphi 0, %s175
    %s179 = sphi 0, %s178
    %s195 = sphi 0, %s179
  $region4: #{_forward_pallas.1} parent=0 // loop_header_branch
    %16 = sbr.rel (%p14) target = $region8
  $region5: #{_forward_pallas.1} parent=0 // loop_body
    %s18 = ssub.s32 %s13, 1
    %s19 = ssub.s32 %s13, 2
    %s20 = sadd.s32 %s13, 1
    %s21 = ssub.s32 %s13, %s20
    %p22 = scmp.eq.s32.totalorder %s21, 0
    %s24 = sadd.s32 %s23, 1
    %s25 = scalar_select %p22, %s23, %s24
    %p28 = pneg %p22
    %p29 = scmp.eq.s32.totalorder %s13, 2
    %p30 = por %p28, %p29
    %p31 = scmp.ne.s32.totalorder %s23, %s26
    %p32 = scmp.eq.s32.totalorder %s13, 0
    %p33 = por %p31, %p32
    %p34 = scmp.ne.s32.totalorder %s23, %s26
    %p35 = scmp.eq.s32.totalorder %s18, 2
    %p36 = por %p34, %p35
    %p37 = scmp.ne.s32.totalorder %s26, %s27
    %p38 = scmp.eq.s32.totalorder %s18, 0
    %p39 = por %p37, %p38
    %p40 = scmp.ne.s32.totalorder %s26, %s27
    %p41 = scmp.eq.s32.totalorder %s19, 2
    %p42 = por %p40, %p41
    %p44 = scmp.ne.s32.totalorder %s27, %s43
    %p45 = scmp.eq.s32.totalorder %s19, 0
    %p46 = por %p44, %p45
    %s48 = sadd.s32 %s47, 1
    %p51 = scmp.eq.s32.totalorder %s13, 2
    %p52 = scmp.ne.s32.totalorder %s47, %s49
    %p53 = scmp.eq.s32.totalorder %s13, 0
    %p54 = por %p52, %p53
    %p55 = scmp.ne.s32.totalorder %s47, %s49
    %p56 = scmp.eq.s32.totalorder %s18, 2
    %p57 = por %p55, %p56
    %p58 = scmp.ne.s32.totalorder %s49, %s50
    %p59 = scmp.eq.s32.totalorder %s18, 0
    %p60 = por %p58, %p59
    %p61 = scmp.ne.s32.totalorder %s49, %s50
    %p62 = scmp.eq.s32.totalorder %s19, 2
    %p63 = por %p61, %p62
    %p65 = scmp.ne.s32.totalorder %s50, %s64
    %p66 = scmp.eq.s32.totalorder %s19, 0
    %p67 = por %p65, %p66
    %s69 = sadd.s32 %s68, 1
    %p72 = scmp.eq.s32.totalorder %s13, 2
    %p73 = scmp.ne.s32.totalorder %s68, %s70
    %p74 = scmp.eq.s32.totalorder %s13, 0
    %p75 = por %p73, %p74
    %p76 = scmp.ne.s32.totalorder %s68, %s70
    %p77 = scmp.eq.s32.totalorder %s18, 2
    %p78 = por %p76, %p77
    %p79 = scmp.ne.s32.totalorder %s70, %s71
    %p80 = scmp.eq.s32.totalorder %s18, 0
    %p81 = por %p79, %p80
    %p82 = scmp.ne.s32.totalorder %s70, %s71
    %p83 = scmp.eq.s32.totalorder %s19, 2
    %p84 = por %p82, %p83
    %p86 = scmp.ne.s32.totalorder %s71, %s85
    %p87 = scmp.eq.s32.totalorder %s19, 0
    %p88 = por %p86, %p87
    %s90 = sadd.s32 %s89, 1
    %p93 = scmp.eq.s32.totalorder %s13, 2
    %p94 = scmp.ne.s32.totalorder %s89, %s91
    %p95 = scmp.eq.s32.totalorder %s13, 0
    %p96 = por %p94, %p95
    %p97 = scmp.ne.s32.totalorder %s89, %s91
    %p98 = scmp.eq.s32.totalorder %s18, 2
    %p99 = por %p97, %p98
    %p100 = scmp.ne.s32.totalorder %s91, %s92
    %p101 = scmp.eq.s32.totalorder %s18, 0
    %p102 = por %p100, %p101
    %p103 = scmp.ne.s32.totalorder %s91, %s92
    %p104 = scmp.eq.s32.totalorder %s19, 2
    %p105 = por %p103, %p104
    %p107 = scmp.ne.s32.totalorder %s92, %s106
    %p108 = scmp.eq.s32.totalorder %s19, 0
    %p109 = por %p107, %p108
    %s111 = sadd.s32 %s110, 1
    %p114 = scmp.eq.s32.totalorder %s13, 2
    %p115 = scmp.ne.s32.totalorder %s110, %s112
    %p116 = scmp.eq.s32.totalorder %s13, 0
    %p117 = por %p115, %p116
    %p118 = scmp.ne.s32.totalorder %s110, %s112
    %p119 = scmp.eq.s32.totalorder %s18, 2
    %p120 = por %p118, %p119
    %p121 = scmp.ne.s32.totalorder %s112, %s113
    %p122 = scmp.eq.s32.totalorder %s18, 0
    %p123 = por %p121, %p122
    %p124 = scmp.ne.s32.totalorder %s112, %s113
    %p125 = scmp.eq.s32.totalorder %s19, 2
    %p126 = por %p124, %p125
    %p128 = scmp.ne.s32.totalorder %s113, %s127
    %p129 = scmp.eq.s32.totalorder %s19, 0
    %p130 = por %p128, %p129
    %s132 = sadd.s32 %s131, 1
    %p135 = scmp.eq.s32.totalorder %s13, 2
    %p136 = scmp.ne.s32.totalorder %s131, %s133
    %p137 = scmp.eq.s32.totalorder %s13, 0
    %p138 = por %p136, %p137
    %p139 = scmp.ne.s32.totalorder %s131, %s133
    %p140 = scmp.eq.s32.totalorder %s18, 2
    %p141 = por %p139, %p140
    %p142 = scmp.ne.s32.totalorder %s133, %s134
    %p143 = scmp.eq.s32.totalorder %s18, 0
    %p144 = por %p142, %p143
    %p145 = scmp.ne.s32.totalorder %s133, %s134
    %p146 = scmp.eq.s32.totalorder %s19, 2
    %p147 = por %p145, %p146
    %p149 = scmp.ne.s32.totalorder %s134, %s148
    %p150 = scmp.eq.s32.totalorder %s19, 0
    %p151 = por %p149, %p150
    %s153 = sadd.s32 %s152, 1
    %p156 = scmp.eq.s32.totalorder %s13, 2
    %p157 = scmp.ne.s32.totalorder %s152, %s154
    %p158 = scmp.eq.s32.totalorder %s13, 0
    %p159 = por %p157, %p158
    %p160 = scmp.ne.s32.totalorder %s152, %s154
    %p161 = scmp.eq.s32.totalorder %s18, 2
    %p162 = por %p160, %p161
    %p163 = scmp.ne.s32.totalorder %s154, %s155
    %p164 = scmp.eq.s32.totalorder %s18, 0
    %p165 = por %p163, %p164
    %p166 = scmp.ne.s32.totalorder %s154, %s155
    %p167 = scmp.eq.s32.totalorder %s19, 2
    %p168 = por %p166, %p167
    %p170 = scmp.ne.s32.totalorder %s155, %s169
    %p171 = scmp.eq.s32.totalorder %s19, 0
    %p172 = por %p170, %p171
    %s173 = ssub.s32 %s13, %s20
    %p174 = scmp.eq.s32.totalorder %s173, 0
    %s176 = sadd.s32 %s175, 1
    %s177 = scalar_select %p174, %s175, %s176
    %p180 = pneg %p174
    %p181 = scmp.eq.s32.totalorder %s13, 2
    %p182 = por %p180, %p181
    %p183 = scmp.ne.s32.totalorder %s175, %s178
    %p184 = scmp.eq.s32.totalorder %s13, 0
    %p185 = por %p183, %p184
    %p186 = scmp.ne.s32.totalorder %s175, %s178
    %p187 = scmp.eq.s32.totalorder %s18, 2
    %p188 = por %p186, %p187
    %p189 = scmp.ne.s32.totalorder %s178, %s179
    %p190 = scmp.eq.s32.totalorder %s18, 0
    %p191 = por %p189, %p190
    %p192 = scmp.ne.s32.totalorder %s178, %s179
    %p193 = scmp.eq.s32.totalorder %s19, 2
    %p194 = por %p192, %p193
    %p196 = scmp.ne.s32.totalorder %s179, %s195
    %p197 = scmp.eq.s32.totalorder %s19, 0
    %p198 = por %p196, %p197
    %p199 = scmp.le.s32.totalorder 1, %s13
    %p200 = scmp.lt.s32.totalorder %s13, 4
    %p201 = pnand %p199, %p200
    %p202 = pneg %p201
    // Predicated region
    $region9: #{_forward_pallas.1} parent=5 // pred_check
      _
    $region10: #{_forward_pallas.1} parent=5 // pred_check_branch
      %204 = sbr.rel (%p201) target = $region12
    $region11: #{_forward_pallas.1} parent=5 // pred_region
      %s205 = ssub.s32 %s13, 1
      // Predicated region
      $region13: #{_forward_pallas.1} parent=11 // pred_check
        %p206 = pneg %p60
      $region14: #{_forward_pallas.1} parent=11 // pred_check_branch
        %208 = sbr.rel (%p206) target = $region16
      $region15: #{_forward_pallas.1} parent=11 // pred_region
        _
      $region16: #{_forward_pallas.1} parent=11 // pred_fallthru
        _
      // Predicated region
      $region17: #{_forward_pallas.1} parent=11 // pred_check
        %p209 = pneg %p81
      $region18: #{_forward_pallas.1} parent=11 // pred_check_branch
        %211 = sbr.rel (%p209) target = $region20
      $region19: #{_forward_pallas.1} parent=11 // pred_region
        _
      $region20: #{_forward_pallas.1} parent=11 // pred_fallthru
        _
      // Predicated region
      $region21: #{_forward_pallas.1} parent=11 // pred_check
        %p212 = pneg %p102
      $region22: #{_forward_pallas.1} parent=11 // pred_check_branch
        %214 = sbr.rel (%p212) target = $region24
      $region23: #{_forward_pallas.1} parent=11 // pred_region
        _
      $region24: #{_forward_pallas.1} parent=11 // pred_fallthru
        _
      // Predicated region
      $region25: #{_forward_pallas.1} parent=11 // pred_check
        %p215 = pneg %p123
      $region26: #{_forward_pallas.1} parent=11 // pred_check_branch
        %217 = sbr.rel (%p215) target = $region28
      $region27: #{_forward_pallas.1} parent=11 // pred_region
        _
      $region28: #{_forward_pallas.1} parent=11 // pred_fallthru
        _
      // Predicated region
      $region29: #{_forward_pallas.1} parent=11 // pred_check
        %p218 = pneg %p144
      $region30: #{_forward_pallas.1} parent=11 // pred_check_branch
        %220 = sbr.rel (%p218) target = $region32
      $region31: #{_forward_pallas.1} parent=11 // pred_region
        _
      $region32: #{_forward_pallas.1} parent=11 // pred_fallthru
        _
      // Predicated region
      $region33: #{_forward_pallas.1} parent=11 // pred_check
        %p221 = pneg %p165
      $region34: #{_forward_pallas.1} parent=11 // pred_check_branch
        %223 = sbr.rel (%p221) target = $region36
      $region35: #{_forward_pallas.1} parent=11 // pred_region
        _
      $region36: #{_forward_pallas.1} parent=11 // pred_fallthru
        _
    $region12: #{_forward_pallas.1} parent=5 // pred_fallthru
      _
    %p224 = scmp.lt.s32.totalorder %s13, 3
    // Predicated region
    $region37: #{_forward_pallas.1} parent=5 // pred_check
      %p225 = pneg %p224
    $region38: #{_forward_pallas.1} parent=5 // pred_check_branch
      %227 = sbr.rel (%p225) target = $region40
    $region39: #{_forward_pallas.1} parent=5 // pred_region
      // Predicated region
      $region41: #{_forward_pallas.1} parent=39 // pred_check
        %p228 = pneg %p33
      $region42: #{_forward_pallas.1} parent=39 // pred_check_branch
        %230 = sbr.rel (%p228) target = $region44
      $region43: #{_forward_pallas.1} parent=39 // pred_region
        %s231 = smul.u32 16, %s13
        %p232 = scmp.lt.s32.totalorder %s231, 47
        %s233 = scalar_select %p232, %s231, 47
        %s234 = smul.addr %s233, 8
        %s235 = scalar_lea.vmem %s0, %s234
        %s236 = smul.u32 16, %s13
      $region44: #{_forward_pallas.1} parent=39 // pred_fallthru
        _
    $region40: #{_forward_pallas.1} parent=5 // pred_fallthru
      _
    %p237 = scmp.le.s32.totalorder 1, %s13
    %p238 = scmp.lt.s32.totalorder %s13, 4
    %p239 = pnand %p237, %p238
    %p240 = pneg %p239
    // Predicated region
    $region45: #{_forward_pallas.1} parent=5 // pred_check
      _
    $region46: #{_forward_pallas.1} parent=5 // pred_check_branch
      %242 = sbr.rel (%p239) target = $region48
    $region47: #{_forward_pallas.1} parent=5 // pred_region
      %s243 = ssub.s32 %s13, 1
      %s244 = smul.u32 16, %s18
      %p245 = scmp.lt.s32.totalorder %s244, 47
      %s246 = scalar_select %p245, %s244, 47
      %s247 = smul.addr %s246, 8
      %s248 = scalar_lea.vmem %s0, %s247
      %p249 = pneg %p39
      %p250 = pneg %p36
      %p251 = pneg %p60
      %p252 = pneg %p57
      %p253 = pneg %p81
      %p254 = pneg %p78
      %p255 = pneg %p102
      %p256 = pneg %p99
      %p257 = pneg %p123
      %p258 = pneg %p120
      %p259 = pneg %p144
      %p260 = pneg %p141
      %p261 = pneg %p165
      %p262 = pneg %p162
      %p263 = pneg %p191
      %p264 = pneg %p188
      %p265 = scmp.lt.s32.totalorder %s18, 2
      %s266 = scalar_select %p265, %s18, 2
      %s267 = smul.addr %s266, 4
      %s268 = scalar_lea.vmem %s7, %s267
      %s269 = smul.u32 16, %s18
      %p270 = scmp.lt.s32.totalorder %s269, 47
      %s271 = scalar_select %p270, %s269, 47
      %s272 = smul.addr %s271, 8
      %s273 = scalar_lea.vmem %s0, %s272
      %s274 = smul.u32 16, %s18
      %p275 = scmp.lt.s32.totalorder %s18, 2
      %s276 = scalar_select %p275, %s18, 2
      %s277 = smul.addr %s276, 4
      %s278 = scalar_lea.vmem %s7, %s277
      %v280 = vld [vmem:[%s273] sm:$0xff]
      %v281 = vld [vmem:[%s273 + $0x8] sm:$0xff]
      %v282 = vld [vmem:[%s273 + $0x10] sm:$0xff]
      %v283 = vld [vmem:[%s273 + $0x18] sm:$0xff]
      %v284 = vld [vmem:[%s273 + $0x20] sm:$0xff]
      %v285 = vld [vmem:[%s273 + $0x28] sm:$0xff]
      %v286 = vld [vmem:[%s273 + $0x30] sm:$0xff]
      %v287 = vld [vmem:[%s273 + $0x38] sm:$0xff]
      %v288 = vld [vmem:[%s273 + $0x40] sm:$0xff]
      %v289 = vld [vmem:[%s273 + $0x48] sm:$0xff]
      %v290 = vld [vmem:[%s273 + $0x50] sm:$0xff]
      %v291 = vld [vmem:[%s273 + $0x58] sm:$0xff]
      %v292 = vld [vmem:[%s273 + $0x60] sm:$0xff]
      %v293 = vld [vmem:[%s273 + $0x68] sm:$0xff]
      %v294 = vld [vmem:[%s273 + $0x70] sm:$0xff]
      %v295 = vld [vmem:[%s273 + $0x78] sm:$0xff]
      %v296 = vpack.c.bf16 %v281, %v280
      %v297 = vpack.c.bf16 %v283, %v282
      %v298 = vpack.c.bf16 %v285, %v284
      %v299 = vpack.c.bf16 %v287, %v286
      %v300 = vpack.c.bf16 %v289, %v288
      %v301 = vpack.c.bf16 %v291, %v290
      %v302 = vpack.c.bf16 %v293, %v292
      %v303 = vpack.c.bf16 %v295, %v294
      %v304 = vld [vmem:[%s1] sm:$0xf]
      %v305 = vld [vmem:[%s1 + $0x4] sm:$0xf]
      %v306 = vld [vmem:[%s1 + $0x8] sm:$0xf]
      %v307 = vld [vmem:[%s1 + $0xc] sm:$0xf]
      %v308 = vld [vmem:[%s1 + $0x10] sm:$0xf]
      %v309 = vld [vmem:[%s1 + $0x14] sm:$0xf]
      %v310 = vld [vmem:[%s1 + $0x18] sm:$0xf]
      %v311 = vld [vmem:[%s1 + $0x1c] sm:$0xf]
      %v320 = vunpack.c.l.b16 %v304
      %v321 = vunpack.c.l.b16 %v305
      %v322 = vunpack.c.l.b16 %v306
      %v323 = vunpack.c.l.b16 %v307
      %v324 = vunpack.c.l.b16 %v308
      %v325 = vunpack.c.l.b16 %v309
      %v326 = vunpack.c.l.b16 %v310
      %v327 = vunpack.c.l.b16 %v311
      %v328 = vpack.c.b16 %v321, %v320
      %v329 = vpack.c.b16 %v323, %v322
      %v330 = vpack.c.b16 %v325, %v324
      %v331 = vpack.c.b16 %v327, %v326
      %vm332 = vcmask 64512
      %v334 = vsel %vm332, %v328, 0
      %v337 = vsel %vm332, %v329, 0
      %v340 = vsel %vm332, %v330, 0
      %v343 = vsel %vm332, %v331, 0
      %v346 = vsel %vm332, %v296, 0
      %v349 = vsel %vm332, %v297, 0
      %v352 = vsel %vm332, %v298, 0
      %v355 = vsel %vm332, %v299, 0
      %v358 = vsel %vm332, %v300, 0
      %v361 = vsel %vm332, %v301, 0
      %v364 = vsel %vm332, %v302, 0
      %v367 = vsel %vm332, %v303, 0
      %369 = vmatprep.subr.bf16.mxu0 0
      %370 = vmatpush1.bf16.xpose.msra.mxu0 %v346
      %371 = vmatprep.subr.bf16.mxu0 0
      %372 = vmatpush1.bf16.xpose.msra.mxu0 %v349
      %373 = vmatprep.subr.bf16.mxu0 0
      %374 = vmatpush1.bf16.xpose.msra.mxu0 %v352
      %375 = vmatprep.subr.bf16.mxu0 0
      %376 = vmatpush1.bf16.xpose.msra.mxu0 %v355
      %377 = vmatprep.subr.bf16.mxu0 0
      %378 = vmatpush1.bf16.xpose.msra.mxu0 %v358
      %379 = vmatprep.subr.bf16.mxu0 0
      %380 = vmatpush1.bf16.xpose.msra.mxu0 %v361
      %381 = vmatprep.subr.bf16.mxu0 0
      %382 = vmatpush1.bf16.xpose.msra.mxu0 %v364
      %383 = vmatprep.subr.bf16.mxu0 0
      %384 = vmatpush1.bf16.xpose.msra.mxu0 %v367
      %385 = vmatprep.subr.bf16.mxu0 0
      %386 = vmatpush1.bf16.xpose.msra.mxu0 0
      %387 = vmatprep.subr.bf16.mxu0 0
      %388 = vmatpush1.bf16.xpose.msra.mxu0 0
      %389 = vmatprep.subr.bf16.mxu0 0
      %390 = vmatpush1.bf16.xpose.msra.mxu0 0
      %391 = vmatprep.subr.bf16.mxu0 0
      %392 = vmatpush1.bf16.xpose.msra.mxu0 0
      %393 = vmatprep.subr.bf16.mxu0 0
      %394 = vmatpush1.bf16.xpose.msra.mxu0 0
      %395 = vmatprep.subr.bf16.mxu0 0
      %396 = vmatpush1.bf16.xpose.msra.mxu0 0
      %397 = vmatprep.subr.bf16.mxu0 0
      %398 = vmatpush1.bf16.xpose.msra.mxu0 0
      %399 = vmatprep.subr.bf16.mxu0 0
      %400 = vmatpush1.bf16.xpose.msra.mxu0 0
      %401 = vmatprep.mubr.bf16.mxu0 0
      %402 = vmatmul.mubr.bf16.gmra.mrb[0].mxu0 %v334
      %v403 = vpop.f32.mrb[0].mxu0
      %v404 = vadd.f32 0.0, %v403
      %v405 = vpop.f32.mrb[0].mxu0
      %v406 = vpop.f32.mrb[0].mxu0
      %v407 = vadd.f32 0.0, %v406
      %v408 = vpop.f32.mrb[0].mxu0
      %409 = vmatprep.mubr.bf16.mxu0 0
      %410 = vmatmul.mubr.bf16.gmra.mrb[0].mxu0 %v337
      %v411 = vpop.f32.mrb[0].mxu0
      %v412 = vadd.f32 0.0, %v411
      %v413 = vpop.f32.mrb[0].mxu0
      %v414 = vpop.f32.mrb[0].mxu0
      %v415 = vadd.f32 0.0, %v414
      %v416 = vpop.f32.mrb[0].mxu0
      %417 = vmatprep.mubr.bf16.mxu0 0
      %418 = vmatmul.mubr.bf16.gmra.mrb[0].mxu0 %v340
      %v419 = vpop.f32.mrb[0].mxu0
      %v420 = vadd.f32 0.0, %v419
      %v421 = vpop.f32.mrb[0].mxu0
      %v422 = vpop.f32.mrb[0].mxu0
      %v423 = vadd.f32 0.0, %v422
      %v424 = vpop.f32.mrb[0].mxu0
      %425 = vmatprep.mubr.bf16.mxu0 0
      %426 = vmatmul.mubr.bf16.gmra.mrb[0].mxu0 %v343
      %v427 = vpop.f32.mrb[0].mxu0
      %v428 = vadd.f32 0.0, %v427
      %v429 = vpop.f32.mrb[0].mxu0
      %v430 = vpop.f32.mrb[0].mxu0
      %v431 = vadd.f32 0.0, %v430
      %v432 = vpop.f32.mrb[0].mxu0
      %433 = vdwg.mxu0
      %v434 = vpack.c.bf16 %v407, %v404
      %v435 = vpack.c.bf16 %v415, %v412
      %v436 = vpack.c.bf16 %v423, %v420
      %v437 = vpack.c.bf16 %v431, %v428
      %v438 = vld [vmem:[%s2] sm:$0xff]
      %v439 = vld [vmem:[%s2 + $0x8] sm:$0xff]
      %v440 = vld [vmem:[%s2 + $0x10] sm:$0xff]
      %v441 = vld [vmem:[%s2 + $0x18] sm:$0xff]
      %v442 = vld [vmem:[%s2 + $0x20] sm:$0xff]
      %v443 = vld [vmem:[%s2 + $0x28] sm:$0xff]
      %v444 = vld [vmem:[%s2 + $0x30] sm:$0xff]
      %v445 = vld [vmem:[%s2 + $0x38] sm:$0xff]
      %v446 = vpack.c.bf16 %v439, %v438
      %v447 = vpack.c.bf16 %v441, %v440
      %v448 = vpack.c.bf16 %v443, %v442
      %v449 = vpack.c.bf16 %v445, %v444
      %451 = vset.pattern.permute.xlu0 0
      %452 = vperm.xlu0 %451, %v446
      %v453 = vpop.permute.xlu0 %452
      %456 = vset.pattern.permute.xlu0 0
      %457 = vperm.xlu0 %456, %v447
      %v458 = vpop.permute.xlu0 %457
      %461 = vset.pattern.permute.xlu0 0
      %462 = vperm.xlu0 %461, %v448
      %v463 = vpop.permute.xlu0 %462
      %466 = vset.pattern.permute.xlu0 0
      %467 = vperm.xlu0 %466, %v449
      %v468 = vpop.permute.xlu0 %467
      %v470 = vadd.bf16 %v434, %v453
      %v471 = vadd.bf16 %v435, %v458
      %v472 = vadd.bf16 %v436, %v463
      %v473 = vadd.bf16 %v437, %v468
      %v474 = vmax.bf16 %v470, 0
      %v475 = vmax.bf16 %v471, 0
      %v476 = vmax.bf16 %v472, 0
      %v477 = vmax.bf16 %v473, 0
      %v478 = vld [vmem:[%s3] sm:$0xf]
      %v479 = vld [vmem:[%s3 + $0x4] sm:$0xf]
      %v480 = vld [vmem:[%s3 + $0x8] sm:$0xf]
      %v481 = vld [vmem:[%s3 + $0xc] sm:$0xf]
      %v482 = vld [vmem:[%s3 + $0x10] sm:$0xf]
      %v483 = vld [vmem:[%s3 + $0x14] sm:$0xf]
      %v484 = vld [vmem:[%s3 + $0x18] sm:$0xf]
      %v485 = vld [vmem:[%s3 + $0x1c] sm:$0xf]
      %v494 = vunpack.c.l.b16 %v478
      %v495 = vunpack.c.l.b16 %v479
      %v496 = vunpack.c.l.b16 %v480
      %v497 = vunpack.c.l.b16 %v481
      %v498 = vunpack.c.l.b16 %v482
      %v499 = vunpack.c.l.b16 %v483
      %v500 = vunpack.c.l.b16 %v484
      %v501 = vunpack.c.l.b16 %v485
      %v502 = vpack.c.b16 %v495, %v494
      %v503 = vpack.c.b16 %v497, %v496
      %v504 = vpack.c.b16 %v499, %v498
      %v505 = vpack.c.b16 %v501, %v500
      %vm506 = vcmask 523264
      %v508 = vsel %vm506, %v502, 0
      %v511 = vsel %vm506, %v503, 0
      %v514 = vsel %vm506, %v504, 0
      %v517 = vsel %vm506, %v505, 0
      %519 = vmatprep.subr.bf16.mxu0 0
      %520 = vmatpush1.bf16.msra.mxu0 %v474
      %521 = vmatprep.subr.bf16.mxu0 0
      %522 = vmatpush1.bf16.msra.mxu0 %v475
      %523 = vmatprep.subr.bf16.mxu0 0
      %524 = vmatpush1.bf16.msra.mxu0 %v476
      %525 = vmatprep.subr.bf16.mxu0 0
      %526 = vmatpush1.bf16.msra.mxu0 %v477
      %527 = vmatprep.subr.bf16.mxu0 0
      %528 = vmatpush1.bf16.msra.mxu0 0
      %529 = vmatprep.subr.bf16.mxu0 0
      %530 = vmatpush1.bf16.msra.mxu0 0
      %531 = vmatprep.subr.bf16.mxu0 0
      %532 = vmatpush1.bf16.msra.mxu0 0
      %533 = vmatprep.subr.bf16.mxu0 0
      %534 = vmatpush1.bf16.msra.mxu0 0
      %535 = vmatprep.subr.bf16.mxu0 0
      %536 = vmatpush1.bf16.msra.mxu0 0
      %537 = vmatprep.subr.bf16.mxu0 0
      %538 = vmatpush1.bf16.msra.mxu0 0
      %539 = vmatprep.subr.bf16.mxu0 0
      %540 = vmatpush1.bf16.msra.mxu0 0
      %541 = vmatprep.subr.bf16.mxu0 0
      %542 = vmatpush1.bf16.msra.mxu0 0
      %543 = vmatprep.subr.bf16.mxu0 0
      %544 = vmatpush1.bf16.msra.mxu0 0
      %545 = vmatprep.subr.bf16.mxu0 0
      %546 = vmatpush1.bf16.msra.mxu0 0
      %547 = vmatprep.subr.bf16.mxu0 0
      %548 = vmatpush1.bf16.msra.mxu0 0
      %549 = vmatprep.subr.bf16.mxu0 0
      %550 = vmatpush1.bf16.msra.mxu0 0
      %551 = vmatprep.mubr.bf16.mxu0 0
      %552 = vmatmul.mubr.bf16.gmra.mrb[0].mxu0 %v508
      %v553 = vpop.f32.mrb[0].mxu0
      %v554 = vadd.f32 0.0, %v553
      %v555 = vpop.f32.mrb[0].mxu0
      %v556 = vpop.f32.mrb[0].mxu0
      %v557 = vadd.f32 0.0, %v556
      %v558 = vpop.f32.mrb[0].mxu0
      %559 = vmatprep.mubr.bf16.mxu0 0
      %560 = vmatmul.mubr.bf16.gmra.mrb[0].mxu0 %v511
      %v561 = vpop.f32.mrb[0].mxu0
      %v562 = vadd.f32 0.0, %v561
      %v563 = vpop.f32.mrb[0].mxu0
      %v564 = vpop.f32.mrb[0].mxu0
      %v565 = vadd.f32 0.0, %v564
      %v566 = vpop.f32.mrb[0].mxu0
      %567 = vmatprep.mubr.bf16.mxu0 0
      %568 = vmatmul.mubr.bf16.gmra.mrb[0].mxu0 %v514
      %v569 = vpop.f32.mrb[0].mxu0
      %v570 = vadd.f32 0.0, %v569
      %v571 = vpop.f32.mrb[0].mxu0
      %v572 = vpop.f32.mrb[0].mxu0
      %v573 = vadd.f32 0.0, %v572
      %v574 = vpop.f32.mrb[0].mxu0
      %575 = vmatprep.mubr.bf16.mxu0 0
      %576 = vmatmul.mubr.bf16.gmra.mrb[0].mxu0 %v517
      %v577 = vpop.f32.mrb[0].mxu0
      %v578 = vadd.f32 0.0, %v577
      %v579 = vpop.f32.mrb[0].mxu0
      %v580 = vpop.f32.mrb[0].mxu0
      %v581 = vadd.f32 0.0, %v580
      %v582 = vpop.f32.mrb[0].mxu0
      %583 = vdwg.mxu0
      %v584 = vpack.c.bf16 %v557, %v554
      %v585 = vpack.c.bf16 %v565, %v562
      %v586 = vpack.c.bf16 %v573, %v570
      %v587 = vpack.c.bf16 %v581, %v578
      %v588 = vld [vmem:[%s4] sm:$0xff]
      %v589 = vld [vmem:[%s4 + $0x8] sm:$0xff]
      %v590 = vld [vmem:[%s4 + $0x10] sm:$0xff]
      %v591 = vld [vmem:[%s4 + $0x18] sm:$0xff]
      %v592 = vld [vmem:[%s4 + $0x20] sm:$0xff]
      %v593 = vld [vmem:[%s4 + $0x28] sm:$0xff]
      %v594 = vld [vmem:[%s4 + $0x30] sm:$0xff]
      %v595 = vld [vmem:[%s4 + $0x38] sm:$0xff]
      %v596 = vpack.c.bf16 %v589, %v588
      %v597 = vpack.c.bf16 %v591, %v590
      %v598 = vpack.c.bf16 %v593, %v592
      %v599 = vpack.c.bf16 %v595, %v594
      %601 = vset.pattern.permute.xlu0 0
      %602 = vperm.xlu0 %601, %v596
      %v603 = vpop.permute.xlu0 %602
      %606 = vset.pattern.permute.xlu0 0
      %607 = vperm.xlu0 %606, %v597
      %v608 = vpop.permute.xlu0 %607
      %611 = vset.pattern.permute.xlu0 0
      %612 = vperm.xlu0 %611, %v598
      %v613 = vpop.permute.xlu0 %612
      %616 = vset.pattern.permute.xlu0 0
      %617 = vperm.xlu0 %616, %v599
      %v618 = vpop.permute.xlu0 %617
      %v620 = vadd.bf16 %v584, %v603
      %v621 = vadd.bf16 %v585, %v608
      %v622 = vadd.bf16 %v586, %v613
      %v623 = vadd.bf16 %v587, %v618
      %v624 = vmax.bf16 %v620, 0
      %v625 = vmax.bf16 %v621, 0
      %v626 = vmax.bf16 %v622, 0
      %v627 = vmax.bf16 %v623, 0
      %v628 = vld [vmem:[%s5] sm:$0x3]
      %v629 = vld [vmem:[%s6] sm:$0xf]
      %631 = vset.pattern.permute.xlu0 0
      %632 = vperm.xlu0 %631, %v629
      %v633 = vpop.permute.xlu0 %632
      %v636 = vsel %vm506, %v628, 0
      %638 = vmatprep.subr.bf16.mxu0 0
      %639 = vmatpush1.bf16.msra.mxu0 %v624
      %640 = vmatprep.subr.bf16.mxu0 0
      %641 = vmatpush1.bf16.msra.mxu0 %v625
      %642 = vmatprep.subr.bf16.mxu0 0
      %643 = vmatpush1.bf16.msra.mxu0 %v626
      %644 = vmatprep.subr.bf16.mxu0 0
      %645 = vmatpush1.bf16.msra.mxu0 %v627
      %646 = vmatprep.subr.bf16.mxu0 0
      %647 = vmatpush1.bf16.msra.mxu0 0
      %648 = vmatprep.subr.bf16.mxu0 0
      %649 = vmatpush1.bf16.msra.mxu0 0
      %650 = vmatprep.subr.bf16.mxu0 0
      %651 = vmatpush1.bf16.msra.mxu0 0
      %652 = vmatprep.subr.bf16.mxu0 0
      %653 = vmatpush1.bf16.msra.mxu0 0
      %654 = vmatprep.subr.bf16.mxu0 0
      %655 = vmatpush1.bf16.msra.mxu0 0
      %656 = vmatprep.subr.bf16.mxu0 0
      %657 = vmatpush1.bf16.msra.mxu0 0
      %658 = vmatprep.subr.bf16.mxu0 0
      %659 = vmatpush1.bf16.msra.mxu0 0
      %660 = vmatprep.subr.bf16.mxu0 0
      %661 = vmatpush1.bf16.msra.mxu0 0
      %662 = vmatprep.subr.bf16.mxu0 0
      %663 = vmatpush1.bf16.msra.mxu0 0
      %664 = vmatprep.subr.bf16.mxu0 0
      %665 = vmatpush1.bf16.msra.mxu0 0
      %666 = vmatprep.subr.bf16.mxu0 0
      %667 = vmatpush1.bf16.msra.mxu0 0
      %668 = vmatprep.subr.bf16.mxu0 0
      %669 = vmatpush1.bf16.msra.mxu0 0
      %670 = vmatprep.mubr.bf16.mxu0 0
      %671 = vmatmul.mubr.bf16.gmra.mrb[0].mxu0 %v636
      %v672 = vpop.f32.mrb[0].mxu0
      %v673 = vadd.f32 %v633, %v672
      %v674 = vpop.f32.mrb[0].mxu0
      %v675 = vpop.f32.mrb[0].mxu0
      %v676 = vpop.f32.mrb[0].mxu0
      %677 = vdwg.mxu0
      %678 = vst [vmem:[%s278] sm:$0xf] %v673
      %p679 = scmp.lt.s32.totalorder %s18, 2
      %s680 = scalar_select %p679, %s18, 2
      %s681 = smul.addr %s680, 4
      %s682 = scalar_lea.vmem %s7, %s681
      // Predicated region
      $region49: #{_forward_pallas.1} parent=47 // pred_check
        %p683 = pneg %p188
      $region50: #{_forward_pallas.1} parent=47 // pred_check_branch
        %685 = sbr.rel (%p683) target = $region52
      $region51: #{_forward_pallas.1} parent=47 // pred_region
        _
      $region52: #{_forward_pallas.1} parent=47 // pred_fallthru
        _
    $region48: #{_forward_pallas.1} parent=5 // pred_fallthru
      _
    %p686 = scmp.le.s32.totalorder 2, %s13
    // Predicated region
    $region53: #{_forward_pallas.1} parent=5 // pred_check
      %p687 = pneg %p686
    $region54: #{_forward_pallas.1} parent=5 // pred_check_branch
      %689 = sbr.rel (%p687) target = $region56
    $region55: #{_forward_pallas.1} parent=5 // pred_region
      %s690 = ssub.s32 %s13, 2
      // Predicated region
      $region57: #{_forward_pallas.1} parent=55 // pred_check
        %p691 = pneg %p194
      $region58: #{_forward_pallas.1} parent=55 // pred_check_branch
        %693 = sbr.rel (%p691) target = $region60
      $region59: #{_forward_pallas.1} parent=55 // pred_region
        %p694 = scmp.lt.s32.totalorder %s19, 2
        %s695 = scalar_select %p694, %s19, 2
        %s696 = smul.addr %s695, 4
        %s697 = scalar_lea.vmem %s7, %s696
      $region60: #{_forward_pallas.1} parent=55 // pred_fallthru
        _
    $region56: #{_forward_pallas.1} parent=5 // pred_fallthru
      _
  $region6: #{_forward_pallas.1} parent=0 // loop_footer
    %s17 = sadd.s32 1, %s13
  $region7: #{_forward_pallas.1} parent=0 // loop_footer_branch
    %12 = sbr.rel target = $region3
  $region8: #{_forward_pallas.1} parent=0 // loop_exit
    _

</llo_original>
